<compile_context>
chip_gen: v7x
topology: tpu7x:2x2x1
jax: 0.10.0
libtpu: 0.0.40
codegen_flags: <defaults>
</compile_context>

<pallas_src>
import jax
import jax.numpy as jnp
from jax.experimental import pallas as pl
from jax.experimental.pallas import tpu as pltpu

_MIB = 1024 * 1024
_LANE_WIDTHS = (512, 256, 128)        # smallest >=512 first -> maximizes row count
_FALLBACK_TILE_COLS = 32 * 1024       # elements per block on the 1-D fallback path
_MIN_GRID_STEPS = 4                   # pipelining depth + v7x dual-TC sharding
_SPLIT_THRESHOLD_BYTES = 1 * _MIB     # below this, a single block is cheapest


def _copy_kernel(x_ref, o_ref):
    # Pure VMEM tile copy; everything else is BlockSpec DMA pipelining.
    o_ref[...] = x_ref[...]


def _vmem_capacity_bytes() -> int:
    """Physical VMEM per TensorCore; conservative default if query unavailable."""
    try:
        return int(pltpu.get_tpu_info().vmem_capacity_bytes)
    except Exception:
        return 64 * _MIB  # v7x-sized default — safe on every generation


def _sublane_multiple(dtype) -> int:
    """Sublane packing: 8 rows/vreg for 4-byte, 16 for 2-byte, 32 for 1-byte."""
    return max(8, 32 // jnp.dtype(dtype).itemsize)


def _round_up(n: int, m: int) -> int:
    return -(-n // m) * m


def _choose_tm(rows: int, cols: int, itemsize: int, sub: int) -> int:
    """Row-tile size: sublane-aligned, VMEM-bounded, and >= _MIN_GRID_STEPS blocks
    whenever the tensor is big enough to be worth splitting."""
    vmem_cap = _vmem_capacity_bytes()
    # Target block: 8 MiB on v7x (64 MiB VMEM), 16 MiB on v5e/v6e (128 MiB).
    block_cap_bytes = max(2 * _MIB, min(16 * _MIB, vmem_cap // 8))
    row_bytes = cols * itemsize
    total_bytes = rows * row_bytes

    if rows <= sub or total_bytes <= _SPLIT_THRESHOLD_BYTES:
        # Tiny tensor: one full-extent block (full-dims exemption covers rows<8).
        return rows

    tm_cap = max(sub, (block_cap_bytes // row_bytes) // sub * sub)
    # Aim for at least _MIN_GRID_STEPS grid steps, rounded to the packing multiple.
    tm_grid = _round_up(pl.cdiv(rows, _MIN_GRID_STEPS), sub)
    tm = max(sub, min(tm_cap, tm_grid))
    if tm >= rows:            # never let the block exceed the array extent
        tm = rows
    return tm


def _copy_2d(x2d: jax.Array, tm: int, rows: int, cols: int) -> jax.Array:
    """Tiled (rows, cols) memcpy with pipelined BlockSpecs (lane-dense cols)."""
    itemsize = jnp.dtype(x2d.dtype).itemsize
    block_bytes = tm * cols * itemsize
    vmem_cap = _vmem_capacity_bytes()
    # in + out, double-buffered (4x block) + headroom; never above ~75% of VMEM.
    vmem_limit = int(min(vmem_cap * 3 // 4, max(32 * _MIB, 5 * block_bytes)))
    grid_m = pl.cdiv(rows, tm)

    return pl.pallas_call(
        _copy_kernel,
        out_shape=jax.ShapeDtypeStruct((rows, cols), x2d.dtype),
        grid=(grid_m,),
        in_specs=[pl.BlockSpec((tm, cols), lambda i: (i, 0))],
        out_specs=pl.BlockSpec((tm, cols), lambda i: (i, 0)),
        compiler_params=pltpu.CompilerParams(
            dimension_semantics=("parallel",),   # independent tiles -> megacore OK
            vmem_limit_bytes=vmem_limit,
        ),
        cost_estimate=pl.CostEstimate(
            flops=0,
            transcendentals=0,
            bytes_accessed=2 * rows * cols * itemsize,
        ),
    )(x2d)


def _copy_flat(xflat: jax.Array, tile_cols: int, total: int) -> jax.Array:
    """1-D tiled memcpy over a (1, total) view — fallback for non-128-divisible
    element counts. Block (1, tile_cols): first dim equals the full dim, last dim
    is a multiple of 128 (or the full dim for tiny inputs); partial last block is
    masked, so no VMEM cliff for large odd-sized tensors."""
    itemsize = jnp.dtype(xflat.dtype).itemsize
    vmem_cap = _vmem_capacity_bytes()
    # Each (1, tile_cols) buffer pads to 8 sublanes in VMEM -> budget 8x raw.
    padded_block = 8 * tile_cols * itemsize
    vmem_limit = int(min(vmem_cap * 3 // 4, max(32 * _MIB, 6 * padded_block)))
    grid_n = pl.cdiv(total, tile_cols)

    return pl.pallas_call(
        _copy_kernel,
        out_shape=jax.ShapeDtypeStruct((1, total), xflat.dtype),
        grid=(grid_n,),
        in_specs=[pl.BlockSpec((1, tile_cols), lambda i: (0, i))],
        out_specs=pl.BlockSpec((1, tile_cols), lambda i: (0, i)),
        compiler_params=pltpu.CompilerParams(
            dimension_semantics=("parallel",),
            vmem_limit_bytes=vmem_limit,
        ),
        cost_estimate=pl.CostEstimate(
            flops=0,
            transcendentals=0,
            bytes_accessed=2 * total * itemsize,
        ),
    )(xflat)


def identity(x: jax.Array) -> jax.Array:
    """Pallas identity: returns a fresh tensor equal to x (same shape & dtype)."""
    # NOTE: if the caller donates x, return x directly (or alias via
    # input_output_aliases={0: 0}) — identity then costs zero HBM traffic.
    if x.size == 0:
        return x  # nothing to copy; avoid degenerate reshapes

    orig_shape = x.shape
    total = int(x.size)
    itemsize = jnp.dtype(x.dtype).itemsize

    # Smallest lane-dense width >= 512 that divides the element count (512 is
    # already unmasked full-width vst; smaller cols => more rows => finer grid).
    cols = None
    for c in _LANE_WIDTHS:
        if total % c == 0:
            cols = c
            break

    if cols is None:
        # Non-128-divisible element count: 1-D tiled fallback over (1, total).
        tile_cols = total if total <= _FALLBACK_TILE_COLS else _FALLBACK_TILE_COLS
        out2d = _copy_flat(x.reshape(1, total), tile_cols, total)
        return out2d.reshape(orig_shape)

    rows = total // cols
    sub = _sublane_multiple(x.dtype)
    tm = _choose_tm(rows, cols, itemsize, sub)

    out2d = _copy_2d(x.reshape(rows, cols), tm, rows, cols)
    return out2d.reshape(orig_shape)


if __name__ == "__main__":
    key = jax.random.PRNGKey(0)

    # Small NCHW input consistent with the module: (2, 4, 16, 16) f32.
    x = jax.random.normal(key, (2, 4, 16, 16), dtype=jnp.float32)
    y = identity(x)
    jax.block_until_ready(y)
    assert y.shape == x.shape, (y.shape, x.shape)
    assert y.dtype == x.dtype, (y.dtype, x.dtype)
    assert bool(jnp.all(y == x)), "identity output mismatch (f32 NCHW)"

    # bf16 tensor exercising the sublane-packing (sub=16) path.
    xb = jax.random.normal(key, (4, 3, 32, 32), dtype=jnp.float32).astype(jnp.bfloat16)
    yb = identity(xb)
    jax.block_until_ready(yb)
    assert yb.shape == xb.shape and yb.dtype == xb.dtype
    assert bool(jnp.all(yb == xb)), "identity output mismatch (bf16)"

    # Moderate tensor (4 MiB) exercising the multi-block pipelined grid (>=4 steps).
    xm = jax.random.normal(key, (4, 16, 128, 128), dtype=jnp.float32)
    ym = identity(xm)
    jax.block_until_ready(ym)
    assert bool(jnp.all(ym == xm)), "identity output mismatch (tiled path)"

    # Odd size hits the non-128-divisible 1-D fallback path.
    xo = jax.random.normal(key, (5, 7), dtype=jnp.float32)
    yo = identity(xo)
    jax.block_until_ready(yo)
    assert bool(jnp.all(yo == xo)), "identity output mismatch (fallback)"

    print("KERNEL_OK")
</pallas_src>

<mosaic_0001>
module attributes {stable_mosaic.version = 11 : i64} {
  func.func @_copy_kernel(%arg0: i32, %arg1: memref<4x512xf32, #tpu.memory_space<vmem>>, %arg2: memref<4x512xf32, #tpu.memory_space<vmem>>) attributes {dimension_semantics = [#tpu.dimension_semantics<parallel>], iteration_bounds = array<i64: 1>, scalar_prefetch = 0 : i64, scratch_operands = 0 : i64, tpu.core_type = #tpu.core_type<tc>, window_params = [{transform_indices = @transform_0, window_bounds = array<i64: 4, 512>}, {transform_indices = @transform_1, window_bounds = array<i64: 4, 512>}]} {
    %c0 = arith.constant 0 : index
    %c0_0 = arith.constant 0 : index
    %0 = vector.load %arg1[%c0, %c0_0] : memref<4x512xf32, #tpu.memory_space<vmem>>, vector<4x512xf32>
    %c0_1 = arith.constant 0 : index
    %c0_2 = arith.constant 0 : index
    %1 = vector.load %arg2[%c0_1, %c0_2] : memref<4x512xf32, #tpu.memory_space<vmem>>, vector<4x512xf32>
    tpu.vector_store %arg2[%c0_1, %c0_2], %0 {strides = array<i32>} : memref<4x512xf32, #tpu.memory_space<vmem>>, vector<4x512xf32>,
    return
  }
  func.func @transform_0(%arg0: i32) -> (i32, i32) {
    %c0_i32 = arith.constant 0 : i32
    %c0_i32_0 = arith.constant 0 : i32
    return %arg0, %c0_i32 : i32, i32
  }
  func.func @transform_1(%arg0: i32) -> (i32, i32) {
    %c0_i32 = arith.constant 0 : i32
    %c0_i32_0 = arith.constant 0 : i32
    return %arg0, %c0_i32 : i32, i32
  }
}

</mosaic_0001>

<llo_original>
// kernel: tpu_custom_call.1
$region0: #{tpu_custom_call.1}
  #allocation0 [shape = 'u32[]', space=smem, size = 0x4, offset = 0x4, fixed_abs, tag = 'smem constant byte address 0x4 - core index']
  #allocation1 [shape = 'u32[144,128]{1,0:T(1,128)}', space=vmem, size = 0x12000, scoped, tag = 'internal scratch']
  %s0 = inlined_call_operand.hbm [shape: f32[4,512], index: 0, kind: input, shape index: {}]
  %s1 = inlined_call_operand.hbm [shape: f32[4,512], index: 1, kind: output, shape index: {}]
  %s2 = sld [smem:[#allocation0]]
  $region18: #{tpu_custom_call.1} parent=0
    _
  %s4 = ssub.s32 1, %s2
  %s5 = scalar_select 0, %s4, %s2
  $region1: #{tpu_custom_call.1} parent=0
    #allocation2 [shape = 'u8[8192]{0}', space=vmem, size = 0x2000, scoped, tag = 'input window, operand 0, single buffered']
    #allocation3 [shape = 's32[1]{0}', space=sflag, size = 0x4, scoped, tag = 'scoped memory for tpu_custom_call.1']
    #allocation4 [shape = 's32[1]{0}', space=sflag, size = 0x4, scoped, tag = 'scoped memory for tpu_custom_call.1']
    #allocation5 [shape = 'u8[8192]{0}', space=vmem, size = 0x2000, scoped, tag = 'output window, operand 0, single buffered']
    %6 = vsyncpa [#allocation3], 0
    %7 = vsyncpa [#allocation4], 0
    // Predicated region
    $region2: #{tpu_custom_call.1} parent=1 // pred_check
      _
    $region3: #{tpu_custom_call.1} parent=1 // pred_check_branch
      %9 = sbr.rel (0) target = $region5
    $region4: #{tpu_custom_call.1} parent=1 // pred_region
      %s11 = ssub.s32 256, 256
      %12 = vsyncadd [#allocation3], %s11
      %s14 = sshll.u32 [#allocation2], 4
      %s15 = int_to_ptr.vmem [resolvable:$true] %s14
      %17 = dma.hbm_to_vmem [thread:$0]  %s0, 256, %s15, [#allocation3]
    $region5: #{tpu_custom_call.1} parent=1 // pred_fallthru
      _
    // Predicated region
    $region6: #{tpu_custom_call.1} parent=1 // pred_check
      _
    $region7: #{tpu_custom_call.1} parent=1 // pred_check_branch
      %19 = sbr.rel (0) target = $region9
    $region8: #{tpu_custom_call.1} parent=1 // pred_region
      %20 = dma.done [#allocation3], 256
    $region9: #{tpu_custom_call.1} parent=1 // pred_fallthru
      _
    %v21 = vld [vmem:[#allocation2] sm:$0xff]
    %v22 = vld [vmem:[#allocation2 + $0x8] sm:$0xff]
    %23 = vst [vmem:[#allocation5] sm:$0xff] %v21
    %24 = vst [vmem:[#allocation5 + $0x8] sm:$0xff] %v22
    // Predicated region
    $region10: #{tpu_custom_call.1} parent=1 // pred_check
      _
    $region11: #{tpu_custom_call.1} parent=1 // pred_check_branch
      %26 = sbr.rel (0) target = $region13
    $region12: #{tpu_custom_call.1} parent=1 // pred_region
      %s28 = ssub.s32 256, 256
      %29 = vsyncadd [#allocation4], %s28
      %s31 = sshll.u32 [#allocation5], 4
      %s32 = int_to_ptr.vmem [resolvable:$true] %s31
      %34 = dma.vmem_to_hbm [thread:$0]  %s32, 256, %s1, [#allocation4]
    $region13: #{tpu_custom_call.1} parent=1 // pred_fallthru
      _
    // Predicated region
    $region14: #{tpu_custom_call.1} parent=1 // pred_check
      _
    $region15: #{tpu_custom_call.1} parent=1 // pred_check_branch
      %36 = sbr.rel (0) target = $region17
    $region16: #{tpu_custom_call.1} parent=1 // pred_region
      %37 = dma.done [#allocation4], 256
    $region17: #{tpu_custom_call.1} parent=1 // pred_fallthru
      _
    %38 = vsyncpa [#allocation3], 1
    %39 = vsyncpa [#allocation4], 1

</llo_original>
